<compile_context>
chip_gen: v7x
topology: tpu7x:2x2x1
jax: 0.10.0
libtpu: 0.0.40
codegen_flags: <defaults>
</compile_context>

<pallas_src>
import jax
import jax.numpy as jnp
from jax import lax
from jax.experimental import pallas as pl
from jax.experimental.pallas import tpu as pltpu

LANE = 128  # lane-dense padding for the output / W2


def gcn_kernel(a_ref, x_ref, w1_ref, b1_ref, w2_ref, b2_ref, o_ref):
    # a_ref: (BN, BN) bf16 block-diagonal 0/1 adjacency, row = dst, col = src.
    a = a_ref[...].astype(jnp.float32)

    # norm='both': a_hat = D_in^{-1/2} A D_out^{-1/2}; degrees from the resident block
    # (off-diagonal blocks are zero, so whole-row/col sums equal per-graph degrees).
    deg_in = jnp.sum(a, axis=1, keepdims=True)       # (BN, 1) in-degree per dst node
    deg_out = jnp.sum(a, axis=0, keepdims=True)      # (1, BN) out-degree per src node
    n_in = jnp.where(deg_in > 0, lax.rsqrt(deg_in), 0.0)
    n_out = jnp.where(deg_out > 0, lax.rsqrt(deg_out), 0.0)
    a_hat = n_in * a * n_out                         # (BN, BN)

    # Layer 1: aggregate (BN,BN)@(BN,F_in), project (BN,F_in)@(F_in,H), ReLU.
    agg1 = jnp.dot(a_hat, x_ref[...], preferred_element_type=jnp.float32)
    h = jnp.dot(agg1, w1_ref[...], preferred_element_type=jnp.float32) + b1_ref[...]
    h = jnp.maximum(h, 0.0)                          # (BN, H)

    # Layer 2: aggregate, then project into the 128-lane padded output tile.
    agg2 = jnp.dot(a_hat, h, preferred_element_type=jnp.float32)
    o_ref[...] = (
        jnp.dot(agg2, w2_ref[...], preferred_element_type=jnp.float32) + b2_ref[...]
    )                                                # (BN, LANE)


@jax.jit
def gcn_forward(adj, feats, w1, b1, w2, b2):
    """adj: (B, N, N) f32 0/1 (row = dst, col = src); feats: (B, N, F_in) f32."""
    B, N, _ = adj.shape
    BN = B * N
    f_in = feats.shape[-1]
    hidden = w1.shape[1]
    f_out = w2.shape[1]
    assert f_out <= LANE, "out_feats must fit within one 128-lane output tile"

    # Block-diagonal 0/1 adjacency for the whole batch (bf16 is exact for 0/1 edges).
    eye_b = jnp.eye(B, dtype=adj.dtype)
    a_bd = jnp.einsum("bij,bc->bicj", adj, eye_b).reshape(BN, BN).astype(jnp.bfloat16)

    x_packed = feats.reshape(BN, f_in).astype(jnp.float32)
    b1_2d = b1.reshape(1, hidden).astype(jnp.float32)
    w2p = jnp.zeros((hidden, LANE), jnp.float32).at[:, :f_out].set(w2)
    b2p = jnp.zeros((1, LANE), jnp.float32).at[:, :f_out].set(b2.reshape(1, f_out))

    flops = (
        3 * BN * BN                                      # a_hat scaling
        + 2 * BN * BN * (f_in + hidden)                  # two aggregation matmuls
        + 2 * BN * (f_in * hidden + hidden * LANE)       # two projection matmuls
    )
    bytes_accessed = (
        a_bd.size * 2 + x_packed.size * 4 + w1.size * 4 + b1_2d.size * 4
        + w2p.size * 4 + b2p.size * 4 + BN * LANE * 4
    )

    out_padded = pl.pallas_call(
        gcn_kernel,
        out_shape=jax.ShapeDtypeStruct((BN, LANE), jnp.float32),
        grid=(1,),
        in_specs=[
            pl.BlockSpec((BN, BN), lambda i: (0, 0)),        # block-diag A (bf16)
            pl.BlockSpec((BN, f_in), lambda i: (0, 0)),      # packed X
            pl.BlockSpec((f_in, hidden), lambda i: (0, 0)),  # W1
            pl.BlockSpec((1, hidden), lambda i: (0, 0)),     # b1
            pl.BlockSpec((hidden, LANE), lambda i: (0, 0)),  # W2 (lane-padded)
            pl.BlockSpec((1, LANE), lambda i: (0, 0)),       # b2 (lane-padded)
        ],
        out_specs=pl.BlockSpec((BN, LANE), lambda i: (0, 0)),
        compiler_params=pltpu.CompilerParams(
            dimension_semantics=("arbitrary",),
        ),
        cost_estimate=pl.CostEstimate(
            flops=flops, transcendentals=2 * BN, bytes_accessed=bytes_accessed
        ),
    )(a_bd, x_packed, w1, b1_2d, w2p, b2p)

    return out_padded[:, :f_out].reshape(B, N, f_out)


def gcn_reference(adj, feats, w1, b1, w2, b2):
    """Pure-JAX f32 reference of batched DGL GraphConv(norm='both') x2 with ReLU."""
    deg_in = jnp.sum(adj, axis=-1, keepdims=True)
    deg_out = jnp.sum(adj, axis=-2, keepdims=True)
    norm_in = jnp.where(deg_in > 0, lax.rsqrt(deg_in), 0.0)
    norm_out = jnp.where(deg_out > 0, lax.rsqrt(deg_out), 0.0)
    a_hat = norm_in * adj * norm_out
    h = jnp.maximum(
        jnp.einsum("bij,bjf->bif", a_hat, feats) @ w1 + b1[None, None, :], 0.0
    )
    return jnp.einsum("bij,bjf->bif", a_hat, h) @ w2 + b2[None, None, :]


if __name__ == "__main__":
    # Batch of small molecule-like graphs.
    B, N = 16, 8
    in_feats, hidden_size, out_feats = 4, 32, 1

    key = jax.random.PRNGKey(0)
    k_adj, k_feat, k_w1, k_w2 = jax.random.split(key, 4)

    # Undirected ring (every node has degree > 0) plus random symmetric chords.
    ring_src = jnp.arange(N)
    ring_dst = (ring_src + 1) % N
    base = jnp.zeros((N, N), jnp.float32).at[ring_dst, ring_src].set(1.0)
    base = jnp.maximum(base, base.T)
    rand = (jax.random.uniform(k_adj, (B, N, N)) < 0.2).astype(jnp.float32)
    rand = jnp.maximum(rand, jnp.swapaxes(rand, -1, -2))
    adj = jnp.maximum(base[None, :, :], rand)          # (B, N, N), symmetric 0/1

    features = jax.random.normal(k_feat, (B, N, in_feats), dtype=jnp.float32)

    # Deterministic Xavier-uniform-ish init (DGL GraphConv default), zero bias.
    def xavier(k, shape):
        fan_in, fan_out = shape
        bound = jnp.sqrt(6.0 / (fan_in + fan_out))
        return jax.random.uniform(k, shape, jnp.float32, -bound, bound)

    w1 = xavier(k_w1, (in_feats, hidden_size))
    b1 = jnp.zeros((hidden_size,), dtype=jnp.float32)
    w2 = xavier(k_w2, (hidden_size, out_feats))
    b2 = jnp.zeros((out_feats,), dtype=jnp.float32)

    out = jax.block_until_ready(gcn_forward(adj, features, w1, b1, w2, b2))

    # Reference at highest matmul precision so the check isn't dominated by XLA's
    # default bf16-pass f32 matmul emulation.
    with jax.default_matmul_precision("highest"):
        ref = jax.block_until_ready(gcn_reference(adj, features, w1, b1, w2, b2))

    assert out.shape == (B, N, out_feats)
    assert jnp.allclose(out, ref, atol=1e-3, rtol=1e-3), (
        f"mismatch vs reference: max |diff| = {jnp.max(jnp.abs(out - ref))}"
    )

    print("KERNEL_OK")
</pallas_src>

<mosaic_0001>
module attributes {stable_mosaic.version = 11 : i64} {
  func.func @gcn_kernel(%arg0: i32, %arg1: memref<128x128xbf16, #tpu.memory_space<vmem>>, %arg2: memref<128x4xf32, #tpu.memory_space<vmem>>, %arg3: memref<4x32xf32, #tpu.memory_space<vmem>>, %arg4: memref<1x32xf32, #tpu.memory_space<vmem>>, %arg5: memref<32x128xf32, #tpu.memory_space<vmem>>, %arg6: memref<1x128xf32, #tpu.memory_space<vmem>>, %arg7: memref<128x128xf32, #tpu.memory_space<vmem>>) attributes {dimension_semantics = [#tpu.dimension_semantics<arbitrary>], iteration_bounds = array<i64: 1>, scalar_prefetch = 0 : i64, scratch_operands = 0 : i64, tpu.core_type = #tpu.core_type<tc>, window_params = [{pipeline_mode = #tpu.pipeline_mode<synchronous>, transform_indices = @transform_0, window_bounds = array<i64: 128, 128>}, {pipeline_mode = #tpu.pipeline_mode<synchronous>, transform_indices = @transform_1, window_bounds = array<i64: 128, 4>}, {pipeline_mode = #tpu.pipeline_mode<synchronous>, transform_indices = @transform_2, window_bounds = array<i64: 4, 32>}, {pipeline_mode = #tpu.pipeline_mode<synchronous>, transform_indices = @transform_3, window_bounds = array<i64: 1, 32>}, {pipeline_mode = #tpu.pipeline_mode<synchronous>, transform_indices = @transform_4, window_bounds = array<i64: 32, 128>}, {pipeline_mode = #tpu.pipeline_mode<synchronous>, transform_indices = @transform_5, window_bounds = array<i64: 1, 128>}, {pipeline_mode = #tpu.pipeline_mode<synchronous>, transform_indices = @transform_6, window_bounds = array<i64: 128, 128>}]} {
    %c0 = arith.constant 0 : index
    %c0_0 = arith.constant 0 : index
    %0 = vector.load %arg1[%c0, %c0_0] : memref<128x128xbf16, #tpu.memory_space<vmem>>, vector<128x128xbf16>
    %1 = arith.extf %0 : vector<128x128xbf16> to vector<128x128xf32>
    %cst = arith.constant dense<0.000000e+00> : vector<128xf32>
    %2 = vector.multi_reduction <add>, %1, %cst [1] : vector<128x128xf32> to vector<128xf32>
    %3 = vector.shape_cast %2 : vector<128xf32> to vector<128x1xf32>
    %cst_1 = arith.constant dense<0.000000e+00> : vector<128xf32>
    %4 = vector.multi_reduction <add>, %1, %cst_1 [0] : vector<128x128xf32> to vector<128xf32>
    %5 = vector.shape_cast %4 : vector<128xf32> to vector<1x128xf32>
    %cst_2 = arith.constant 0.000000e+00 : f32
    %6 = vector.broadcast %cst_2 : f32 to vector<128x1xf32>
    %7 = arith.cmpf ogt, %3, %6 : vector<128x1xf32>
    %8 = math.rsqrt %3 : vector<128x1xf32>
    %cst_3 = arith.constant 0.000000e+00 : f32
    %9 = vector.broadcast %cst_3 : f32 to vector<128x1xf32>
    %10 = arith.select %7, %8, %9 : vector<128x1xi1>, vector<128x1xf32>
    %cst_4 = arith.constant 0.000000e+00 : f32
    %11 = vector.broadcast %cst_4 : f32 to vector<1x128xf32>
    %12 = arith.cmpf ogt, %5, %11 : vector<1x128xf32>
    %13 = math.rsqrt %5 : vector<1x128xf32>
    %cst_5 = arith.constant 0.000000e+00 : f32
    %14 = vector.broadcast %cst_5 : f32 to vector<1x128xf32>
    %15 = arith.select %12, %13, %14 : vector<1x128xi1>, vector<1x128xf32>
    %16 = vector.broadcast %10 : vector<128x1xf32> to vector<128x128xf32>
    %17 = arith.mulf %16, %1 : vector<128x128xf32>
    %18 = vector.broadcast %15 : vector<1x128xf32> to vector<128x128xf32>
    %19 = arith.mulf %17, %18 : vector<128x128xf32>
    %c0_6 = arith.constant 0 : index
    %c0_7 = arith.constant 0 : index
    %20 = vector.load %arg2[%c0_6, %c0_7] : memref<128x4xf32, #tpu.memory_space<vmem>>, vector<128x4xf32>
    %cst_8 = arith.constant dense<0.000000e+00> : vector<128x4xf32>
    %21 = tpu.matmul %19, %20, %cst_8 {dimension_numbers = #tpu.dot_dimension_numbers<[1], [0], [0], [1], [0, 0, 1, 1], [], []>} : vector<128x128xf32>, vector<128x4xf32>, vector<128x4xf32> -> vector<128x4xf32>
    %c0_9 = arith.constant 0 : index
    %c0_10 = arith.constant 0 : index
    %22 = vector.load %arg3[%c0_9, %c0_10] : memref<4x32xf32, #tpu.memory_space<vmem>>, vector<4x32xf32>
    %cst_11 = arith.constant dense<0.000000e+00> : vector<128x32xf32>
    %23 = tpu.matmul %21, %22, %cst_11 {dimension_numbers = #tpu.dot_dimension_numbers<[1], [0], [0], [1], [0, 0, 1, 1], [], []>} : vector<128x4xf32>, vector<4x32xf32>, vector<128x32xf32> -> vector<128x32xf32>
    %c0_12 = arith.constant 0 : index
    %c0_13 = arith.constant 0 : index
    %24 = vector.load %arg4[%c0_12, %c0_13] : memref<1x32xf32, #tpu.memory_space<vmem>>, vector<1x32xf32>
    %25 = vector.broadcast %24 : vector<1x32xf32> to vector<128x32xf32>
    %26 = arith.addf %23, %25 : vector<128x32xf32>
    %cst_14 = arith.constant 0.000000e+00 : f32
    %27 = vector.broadcast %cst_14 : f32 to vector<128x32xf32>
    %28 = arith.maximumf %26, %27 : vector<128x32xf32>
    %cst_15 = arith.constant dense<0.000000e+00> : vector<128x32xf32>
    %29 = tpu.matmul %19, %28, %cst_15 {dimension_numbers = #tpu.dot_dimension_numbers<[1], [0], [0], [1], [0, 0, 1, 1], [], []>} : vector<128x128xf32>, vector<128x32xf32>, vector<128x32xf32> -> vector<128x32xf32>
    %c0_16 = arith.constant 0 : index
    %c0_17 = arith.constant 0 : index
    %30 = vector.load %arg5[%c0_16, %c0_17] : memref<32x128xf32, #tpu.memory_space<vmem>>, vector<32x128xf32>
    %cst_18 = arith.constant dense<0.000000e+00> : vector<128x128xf32>
    %31 = tpu.matmul %29, %30, %cst_18 {dimension_numbers = #tpu.dot_dimension_numbers<[1], [0], [0], [1], [0, 0, 1, 1], [], []>} : vector<128x32xf32>, vector<32x128xf32>, vector<128x128xf32> -> vector<128x128xf32>
    %c0_19 = arith.constant 0 : index
    %c0_20 = arith.constant 0 : index
    %32 = vector.load %arg6[%c0_19, %c0_20] : memref<1x128xf32, #tpu.memory_space<vmem>>, vector<1x128xf32>
    %33 = vector.broadcast %32 : vector<1x128xf32> to vector<128x128xf32>
    %34 = arith.addf %31, %33 : vector<128x128xf32>
    %c0_21 = arith.constant 0 : index
    %c0_22 = arith.constant 0 : index
    %35 = vector.load %arg7[%c0_21, %c0_22] : memref<128x128xf32, #tpu.memory_space<vmem>>, vector<128x128xf32>
    tpu.vector_store %arg7[%c0_21, %c0_22], %34 {strides = array<i32>} : memref<128x128xf32, #tpu.memory_space<vmem>>, vector<128x128xf32>,
    return
  }
  func.func @transform_0(%arg0: i32) -> (i32, i32) {
    %c0_i32 = arith.constant 0 : i32
    %c0_i32_0 = arith.constant 0 : i32
    %c0_i32_1 = arith.constant 0 : i32
    return %c0_i32, %c0_i32_0 : i32, i32
  }
  func.func @transform_1(%arg0: i32) -> (i32, i32) {
    %c0_i32 = arith.constant 0 : i32
    %c0_i32_0 = arith.constant 0 : i32
    %c0_i32_1 = arith.constant 0 : i32
    return %c0_i32, %c0_i32_0 : i32, i32
  }
  func.func @transform_2(%arg0: i32) -> (i32, i32) {
    %c0_i32 = arith.constant 0 : i32
    %c0_i32_0 = arith.constant 0 : i32
    %c0_i32_1 = arith.constant 0 : i32
    return %c0_i32, %c0_i32_0 : i32, i32
  }
  func.func @transform_3(%arg0: i32) -> (i32, i32) {
    %c0_i32 = arith.constant 0 : i32
    %c0_i32_0 = arith.constant 0 : i32
    %c0_i32_1 = arith.constant 0 : i32
    return %c0_i32, %c0_i32_0 : i32, i32
  }
  func.func @transform_4(%arg0: i32) -> (i32, i32) {
    %c0_i32 = arith.constant 0 : i32
    %c0_i32_0 = arith.constant 0 : i32
    %c0_i32_1 = arith.constant 0 : i32
    return %c0_i32, %c0_i32_0 : i32, i32
  }
  func.func @transform_5(%arg0: i32) -> (i32, i32) {
    %c0_i32 = arith.constant 0 : i32
    %c0_i32_0 = arith.constant 0 : i32
    %c0_i32_1 = arith.constant 0 : i32
    return %c0_i32, %c0_i32_0 : i32, i32
  }
  func.func @transform_6(%arg0: i32) -> (i32, i32) {
    %c0_i32 = arith.constant 0 : i32
    %c0_i32_0 = arith.constant 0 : i32
    %c0_i32_1 = arith.constant 0 : i32
    return %c0_i32, %c0_i32_0 : i32, i32
  }
}

</mosaic_0001>

<llo_original>
// kernel: gcn_forward.1
$region0: #{gcn_forward.1}
  #allocation0 [shape = 'u32[]', space=smem, size = 0x4, offset = 0x4, fixed_abs, tag = 'smem constant byte address 0x4 - core index']
  #allocation1 [shape = 'u32[144,128]{1,0:T(1,128)}', space=vmem, size = 0x12000, scoped, tag = 'internal scratch']
  %s0 = inlined_call_operand.vmem [shape: bf16[128,128], index: 0, kind: input, shape index: {}]
  %s1 = inlined_call_operand.vmem [shape: f32[128,4], index: 1, kind: input, shape index: {}]
  %s2 = inlined_call_operand.vmem [shape: f32[4,32], index: 2, kind: input, shape index: {}]
  %s3 = inlined_call_operand.vmem [shape: f32[1,32], index: 3, kind: input, shape index: {}]
  %s4 = inlined_call_operand.vmem [shape: f32[32,128], index: 4, kind: input, shape index: {}]
  %s5 = inlined_call_operand.vmem [shape: f32[1,128], index: 5, kind: input, shape index: {}]
  %s6 = inlined_call_operand.vmem [shape: f32[128,128], index: 6, kind: output, shape index: {}]
  %s7 = sld [smem:[#allocation0]]
  $region34: #{gcn_forward.1} parent=0
    _
  %s9 = ssub.s32 1, %s7
  %s10 = scalar_select 0, %s9, %s7
  // Predicated region
  $region2: #{gcn_forward.1} parent=0 // pred_check
    _
  $region3: #{gcn_forward.1} parent=0 // pred_check_branch
    %12 = sbr.rel (0) target = $region5
  $region4: #{gcn_forward.1} parent=0 // pred_region
    _
  $region5: #{gcn_forward.1} parent=0 // pred_fallthru
    _
  // Predicated region
  $region6: #{gcn_forward.1} parent=0 // pred_check
    _
  $region7: #{gcn_forward.1} parent=0 // pred_check_branch
    %14 = sbr.rel (0) target = $region9
  $region8: #{gcn_forward.1} parent=0 // pred_region
    _
  $region9: #{gcn_forward.1} parent=0 // pred_fallthru
    _
  // Predicated region
  $region10: #{gcn_forward.1} parent=0 // pred_check
    _
  $region11: #{gcn_forward.1} parent=0 // pred_check_branch
    %16 = sbr.rel (0) target = $region13
  $region12: #{gcn_forward.1} parent=0 // pred_region
    _
  $region13: #{gcn_forward.1} parent=0 // pred_fallthru
    _
  // Predicated region
  $region14: #{gcn_forward.1} parent=0 // pred_check
    _
  $region15: #{gcn_forward.1} parent=0 // pred_check_branch
    %18 = sbr.rel (0) target = $region17
  $region16: #{gcn_forward.1} parent=0 // pred_region
    _
  $region17: #{gcn_forward.1} parent=0 // pred_fallthru
    _
  // Predicated region
  $region18: #{gcn_forward.1} parent=0 // pred_check
    _
  $region19: #{gcn_forward.1} parent=0 // pred_check_branch
    %20 = sbr.rel (0) target = $region21
  $region20: #{gcn_forward.1} parent=0 // pred_region
    _
  $region21: #{gcn_forward.1} parent=0 // pred_fallthru
    _
  // Predicated region
  $region22: #{gcn_forward.1} parent=0 // pred_check
    _
  $region23: #{gcn_forward.1} parent=0 // pred_check_branch
    %22 = sbr.rel (0) target = $region25
  $region24: #{gcn_forward.1} parent=0 // pred_region
    _
  $region25: #{gcn_forward.1} parent=0 // pred_fallthru
    _
  %v23 = vld [vmem:[%s0] sm:$0xf]
  %v24 = vld [vmem:[%s0 + $0x4] sm:$0xf]
  %v25 = vld [vmem:[%s0 + $0x8] sm:$0xf]
  %v26 = vld [vmem:[%s0 + $0xc] sm:$0xf]
  %v27 = vld [vmem:[%s0 + $0x10] sm:$0xf]
  %v28 = vld [vmem:[%s0 + $0x14] sm:$0xf]
  %v29 = vld [vmem:[%s0 + $0x18] sm:$0xf]
  %v30 = vld [vmem:[%s0 + $0x1c] sm:$0xf]
  %v31 = vld [vmem:[%s0 + $0x20] sm:$0xf]
  %v32 = vld [vmem:[%s0 + $0x24] sm:$0xf]
  %v33 = vld [vmem:[%s0 + $0x28] sm:$0xf]
  %v34 = vld [vmem:[%s0 + $0x2c] sm:$0xf]
  %v35 = vld [vmem:[%s0 + $0x30] sm:$0xf]
  %v36 = vld [vmem:[%s0 + $0x34] sm:$0xf]
  %v37 = vld [vmem:[%s0 + $0x38] sm:$0xf]
  %v38 = vld [vmem:[%s0 + $0x3c] sm:$0xf]
  %v39 = vunpack.c.l.bf16 %v23
  %v40 = vunpack.c.l.bf16 %v24
  %v41 = vunpack.c.l.bf16 %v25
  %v42 = vunpack.c.l.bf16 %v26
  %v43 = vunpack.c.l.bf16 %v27
  %v44 = vunpack.c.l.bf16 %v28
  %v45 = vunpack.c.l.bf16 %v29
  %v46 = vunpack.c.l.bf16 %v30
  %v47 = vunpack.c.l.bf16 %v31
  %v48 = vunpack.c.l.bf16 %v32
  %v49 = vunpack.c.l.bf16 %v33
  %v50 = vunpack.c.l.bf16 %v34
  %v51 = vunpack.c.l.bf16 %v35
  %v52 = vunpack.c.l.bf16 %v36
  %v53 = vunpack.c.l.bf16 %v37
  %v54 = vunpack.c.l.bf16 %v38
  %55 = vadd.xlane.f32.xlu0 %v39
  %v56 = vpop.xlane.xlu0 %55
  %57 = vadd.xlane.f32.xlu0 %v40
  %v58 = vpop.xlane.xlu0 %57
  %59 = vadd.xlane.f32.xlu0 %v41
  %v60 = vpop.xlane.xlu0 %59
  %61 = vadd.xlane.f32.xlu0 %v42
  %v62 = vpop.xlane.xlu0 %61
  %63 = vadd.xlane.f32.xlu0 %v43
  %v64 = vpop.xlane.xlu0 %63
  %65 = vadd.xlane.f32.xlu0 %v44
  %v66 = vpop.xlane.xlu0 %65
  %67 = vadd.xlane.f32.xlu0 %v45
  %v68 = vpop.xlane.xlu0 %67
  %69 = vadd.xlane.f32.xlu0 %v46
  %v70 = vpop.xlane.xlu0 %69
  %71 = vadd.xlane.f32.xlu0 %v47
  %v72 = vpop.xlane.xlu0 %71
  %73 = vadd.xlane.f32.xlu0 %v48
  %v74 = vpop.xlane.xlu0 %73
  %75 = vadd.xlane.f32.xlu0 %v49
  %v76 = vpop.xlane.xlu0 %75
  %77 = vadd.xlane.f32.xlu0 %v50
  %v78 = vpop.xlane.xlu0 %77
  %79 = vadd.xlane.f32.xlu0 %v51
  %v80 = vpop.xlane.xlu0 %79
  %81 = vadd.xlane.f32.xlu0 %v52
  %v82 = vpop.xlane.xlu0 %81
  %83 = vadd.xlane.f32.xlu0 %v53
  %v84 = vpop.xlane.xlu0 %83
  %85 = vadd.xlane.f32.xlu0 %v54
  %v86 = vpop.xlane.xlu0 %85
  %v87 = vadd.f32 %v39, %v40
  %v88 = vadd.f32 %v87, %v41
  %v89 = vadd.f32 %v88, %v42
  %v90 = vadd.f32 %v89, %v43
  %v91 = vadd.f32 %v90, %v44
  %v92 = vadd.f32 %v91, %v45
  %v93 = vadd.f32 %v92, %v46
  %v94 = vadd.f32 %v93, %v47
  %v95 = vadd.f32 %v94, %v48
  %v96 = vadd.f32 %v95, %v49
  %v97 = vadd.f32 %v96, %v50
  %v98 = vadd.f32 %v97, %v51
  %v99 = vadd.f32 %v98, %v52
  %v100 = vadd.f32 %v99, %v53
  %v101 = vadd.f32 %v100, %v54
  %v102 = vrot.slane %v101, 4
  %v103 = vadd.f32 %v101, %v102
  %v104 = vrot.slane %v103, 2
  %v105 = vadd.f32 %v103, %v104
  %v106 = vrot.slane %v105, 1
  %v107 = vadd.f32 %v105, %v106
  %vm108 = vcmp.gt.f32.partialorder %v56, 0.0
  %vm109 = vcmp.gt.f32.partialorder %v58, 0.0
  %vm110 = vcmp.gt.f32.partialorder %v60, 0.0
  %vm111 = vcmp.gt.f32.partialorder %v62, 0.0
  %vm112 = vcmp.gt.f32.partialorder %v64, 0.0
  %vm113 = vcmp.gt.f32.partialorder %v66, 0.0
  %vm114 = vcmp.gt.f32.partialorder %v68, 0.0
  %vm115 = vcmp.gt.f32.partialorder %v70, 0.0
  %vm116 = vcmp.gt.f32.partialorder %v72, 0.0
  %vm117 = vcmp.gt.f32.partialorder %v74, 0.0
  %vm118 = vcmp.gt.f32.partialorder %v76, 0.0
  %vm119 = vcmp.gt.f32.partialorder %v78, 0.0
  %vm120 = vcmp.gt.f32.partialorder %v80, 0.0
  %vm121 = vcmp.gt.f32.partialorder %v82, 0.0
  %vm122 = vcmp.gt.f32.partialorder %v84, 0.0
  %vm123 = vcmp.gt.f32.partialorder %v86, 0.0
  %v124 = vrsqrt.pop %v56
  %v125 = vrsqrt.pop %v58
  %v126 = vrsqrt.pop %v60
  %v127 = vrsqrt.pop %v62
  %v128 = vrsqrt.pop %v64
  %v129 = vrsqrt.pop %v66
  %v130 = vrsqrt.pop %v68
  %v131 = vrsqrt.pop %v70
  %v132 = vrsqrt.pop %v72
  %v133 = vrsqrt.pop %v74
  %v134 = vrsqrt.pop %v76
  %v135 = vrsqrt.pop %v78
  %v136 = vrsqrt.pop %v80
  %v137 = vrsqrt.pop %v82
  %v138 = vrsqrt.pop %v84
  %v139 = vrsqrt.pop %v86
  %v140 = vsel %vm108, %v124, 0.0
  %v141 = vsel %vm109, %v125, 0.0
  %v142 = vsel %vm110, %v126, 0.0
  %v143 = vsel %vm111, %v127, 0.0
  %v144 = vsel %vm112, %v128, 0.0
  %v145 = vsel %vm113, %v129, 0.0
  %v146 = vsel %vm114, %v130, 0.0
  %v147 = vsel %vm115, %v131, 0.0
  %v148 = vsel %vm116, %v132, 0.0
  %v149 = vsel %vm117, %v133, 0.0
  %v150 = vsel %vm118, %v134, 0.0
  %v151 = vsel %vm119, %v135, 0.0
  %v152 = vsel %vm120, %v136, 0.0
  %v153 = vsel %vm121, %v137, 0.0
  %v154 = vsel %vm122, %v138, 0.0
  %v155 = vsel %vm123, %v139, 0.0
  %vm156 = vcmp.gt.f32.partialorder %v107, 0.0
  %v157 = vrsqrt.pop %v107
  %v158 = vsel %vm156, %v157, 0.0
  %v159 = vmul.f32 %v140, %v39
  %v160 = vmul.f32 %v141, %v40
  %v161 = vmul.f32 %v142, %v41
  %v162 = vmul.f32 %v143, %v42
  %v163 = vmul.f32 %v144, %v43
  %v164 = vmul.f32 %v145, %v44
  %v165 = vmul.f32 %v146, %v45
  %v166 = vmul.f32 %v147, %v46
  %v167 = vmul.f32 %v148, %v47
  %v168 = vmul.f32 %v149, %v48
  %v169 = vmul.f32 %v150, %v49
  %v170 = vmul.f32 %v151, %v50
  %v171 = vmul.f32 %v152, %v51
  %v172 = vmul.f32 %v153, %v52
  %v173 = vmul.f32 %v154, %v53
  %v174 = vmul.f32 %v155, %v54
  %v175 = vmul.f32 %v159, %v158
  %v176 = vmul.f32 %v160, %v158
  %v177 = vmul.f32 %v161, %v158
  %v178 = vmul.f32 %v162, %v158
  %v179 = vmul.f32 %v163, %v158
  %v180 = vmul.f32 %v164, %v158
  %v181 = vmul.f32 %v165, %v158
  %v182 = vmul.f32 %v166, %v158
  %v183 = vmul.f32 %v167, %v158
  %v184 = vmul.f32 %v168, %v158
  %v185 = vmul.f32 %v169, %v158
  %v186 = vmul.f32 %v170, %v158
  %v187 = vmul.f32 %v171, %v158
  %v188 = vmul.f32 %v172, %v158
  %v189 = vmul.f32 %v173, %v158
  %v190 = vmul.f32 %v174, %v158
  %v191 = vld [vmem:[%s1] sm:$0xff]
  %v192 = vld [vmem:[%s1 + $0x8] sm:$0xff]
  %v193 = vld [vmem:[%s1 + $0x10] sm:$0xff]
  %v194 = vld [vmem:[%s1 + $0x18] sm:$0xff]
  %v195 = vld [vmem:[%s1 + $0x20] sm:$0xff]
  %v196 = vld [vmem:[%s1 + $0x28] sm:$0xff]
  %v197 = vld [vmem:[%s1 + $0x30] sm:$0xff]
  %v198 = vld [vmem:[%s1 + $0x38] sm:$0xff]
  %v199 = vld [vmem:[%s1 + $0x40] sm:$0xff]
  %v200 = vld [vmem:[%s1 + $0x48] sm:$0xff]
  %v201 = vld [vmem:[%s1 + $0x50] sm:$0xff]
  %v202 = vld [vmem:[%s1 + $0x58] sm:$0xff]
  %v203 = vld [vmem:[%s1 + $0x60] sm:$0xff]
  %v204 = vld [vmem:[%s1 + $0x68] sm:$0xff]
  %v205 = vld [vmem:[%s1 + $0x70] sm:$0xff]
  %v206 = vld [vmem:[%s1 + $0x78] sm:$0xff]
  %207 = vmatprep.subr.mxu0 0.0
  %208 = vmatpush1.msra.mxu0 %v191
  %209 = vmatprep.subr.mxu0 0.0
  %210 = vmatpush1.msra.mxu0 %v192
  %211 = vmatprep.subr.mxu0 0.0
  %212 = vmatpush1.msra.mxu0 %v193
  %213 = vmatprep.subr.mxu0 0.0
  %214 = vmatpush1.msra.mxu0 %v194
  %215 = vmatprep.subr.mxu0 0.0
  %216 = vmatpush1.msra.mxu0 %v195
  %217 = vmatprep.subr.mxu0 0.0
  %218 = vmatpush1.msra.mxu0 %v196
  %219 = vmatprep.subr.mxu0 0.0
  %220 = vmatpush1.msra.mxu0 %v197
  %221 = vmatprep.subr.mxu0 0.0
  %222 = vmatpush1.msra.mxu0 %v198
  %223 = vmatprep.subr.mxu0 0.0
  %224 = vmatpush1.msra.mxu0 %v199
  %225 = vmatprep.subr.mxu0 0.0
  %226 = vmatpush1.msra.mxu0 %v200
  %227 = vmatprep.subr.mxu0 0.0
  %228 = vmatpush1.msra.mxu0 %v201
  %229 = vmatprep.subr.mxu0 0.0
  %230 = vmatpush1.msra.mxu0 %v202
  %231 = vmatprep.subr.mxu0 0.0
  %232 = vmatpush1.msra.mxu0 %v203
  %233 = vmatprep.subr.mxu0 0.0
  %234 = vmatpush1.msra.mxu0 %v204
  %235 = vmatprep.subr.mxu0 0.0
  %236 = vmatpush1.msra.mxu0 %v205
  %237 = vmatprep.subr.mxu0 0.0
  %238 = vmatpush1.msra.mxu0 %v206
  %239 = vmatprep.subr.mxu0 0.0
  %240 = vmatpush1.msra.mxu0 0.0
  %241 = vmatprep.subr.mxu0 0.0
  %242 = vmatpush1.msra.mxu0 0.0
  %243 = vmatprep.subr.mxu0 0.0
  %244 = vmatpush1.msra.mxu0 0.0
  %245 = vmatprep.subr.mxu0 0.0
  %246 = vmatpush1.msra.mxu0 0.0
  %247 = vmatprep.subr.mxu0 0.0
  %248 = vmatpush1.msra.mxu0 0.0
  %249 = vmatprep.subr.mxu0 0.0
  %250 = vmatpush1.msra.mxu0 0.0
  %251 = vmatprep.subr.mxu0 0.0
  %252 = vmatpush1.msra.mxu0 0.0
  %253 = vmatprep.subr.mxu0 0.0
  %254 = vmatpush1.msra.mxu0 0.0
  %255 = vmatprep.subr.mxu0 0.0
  %256 = vmatpush1.msra.mxu0 0.0
  %257 = vmatprep.subr.mxu0 0.0
  %258 = vmatpush1.msra.mxu0 0.0
  %259 = vmatprep.subr.mxu0 0.0
  %260 = vmatpush1.msra.mxu0 0.0
  %261 = vmatprep.subr.mxu0 0.0
  %262 = vmatpush1.msra.mxu0 0.0
  %263 = vmatprep.subr.mxu0 0.0
  %264 = vmatpush1.msra.mxu0 0.0
  %265 = vmatprep.subr.mxu0 0.0
  %266 = vmatpush1.msra.mxu0 0.0
  %267 = vmatprep.subr.mxu0 0.0
  %268 = vmatpush1.msra.mxu0 0.0
  %269 = vmatprep.subr.mxu0 0.0
  %270 = vmatpush1.msra.mxu0 0.0
  %271 = vmatprep.mubr.f32.mxu0 0.0
  %272 = vmatmul.mubr.f32.gmra.mrb[0].mxu0 %v175
  %v273 = vpop.f32.mrb[0].mxu0
  %v274 = vadd.f32 0.0, %v273
  %v275 = vpop.f32.mrb[0].mxu0
  %276 = vmatprep.mubr.f32.mxu0 0.0
  %277 = vmatmul.mubr.f32.gmra.mrb[0].mxu0 %v176
  %v278 = vpop.f32.mrb[0].mxu0
  %v279 = vadd.f32 0.0, %v278
  %v280 = vpop.f32.mrb[0].mxu0
  %281 = vmatprep.mubr.f32.mxu0 0.0
  %282 = vmatmul.mubr.f32.gmra.mrb[0].mxu0 %v177
  %v283 = vpop.f32.mrb[0].mxu0
  %v284 = vadd.f32 0.0, %v283
  %v285 = vpop.f32.mrb[0].mxu0
  %286 = vmatprep.mubr.f32.mxu0 0.0
  %287 = vmatmul.mubr.f32.gmra.mrb[0].mxu0 %v178
  %v288 = vpop.f32.mrb[0].mxu0
  %v289 = vadd.f32 0.0, %v288
  %v290 = vpop.f32.mrb[0].mxu0
  %291 = vmatprep.mubr.f32.mxu0 0.0
  %292 = vmatmul.mubr.f32.gmra.mrb[0].mxu0 %v179
  %v293 = vpop.f32.mrb[0].mxu0
  %v294 = vadd.f32 0.0, %v293
  %v295 = vpop.f32.mrb[0].mxu0
  %296 = vmatprep.mubr.f32.mxu0 0.0
  %297 = vmatmul.mubr.f32.gmra.mrb[0].mxu0 %v180
  %v298 = vpop.f32.mrb[0].mxu0
  %v299 = vadd.f32 0.0, %v298
  %v300 = vpop.f32.mrb[0].mxu0
  %301 = vmatprep.mubr.f32.mxu0 0.0
  %302 = vmatmul.mubr.f32.gmra.mrb[0].mxu0 %v181
  %v303 = vpop.f32.mrb[0].mxu0
  %v304 = vadd.f32 0.0, %v303
  %v305 = vpop.f32.mrb[0].mxu0
  %306 = vmatprep.mubr.f32.mxu0 0.0
  %307 = vmatmul.mubr.f32.gmra.mrb[0].mxu0 %v182
  %v308 = vpop.f32.mrb[0].mxu0
  %v309 = vadd.f32 0.0, %v308
  %v310 = vpop.f32.mrb[0].mxu0
  %311 = vmatprep.mubr.f32.mxu0 0.0
  %312 = vmatmul.mubr.f32.gmra.mrb[0].mxu0 %v183
  %v313 = vpop.f32.mrb[0].mxu0
  %v314 = vadd.f32 0.0, %v313
  %v315 = vpop.f32.mrb[0].mxu0
  %316 = vmatprep.mubr.f32.mxu0 0.0
  %317 = vmatmul.mubr.f32.gmra.mrb[0].mxu0 %v184
  %v318 = vpop.f32.mrb[0].mxu0
  %v319 = vadd.f32 0.0, %v318
  %v320 = vpop.f32.mrb[0].mxu0
  %321 = vmatprep.mubr.f32.mxu0 0.0
  %322 = vmatmul.mubr.f32.gmra.mrb[0].mxu0 %v185
  %v323 = vpop.f32.mrb[0].mxu0
  %v324 = vadd.f32 0.0, %v323
  %v325 = vpop.f32.mrb[0].mxu0
  %326 = vmatprep.mubr.f32.mxu0 0.0
  %327 = vmatmul.mubr.f32.gmra.mrb[0].mxu0 %v186
  %v328 = vpop.f32.mrb[0].mxu0
  %v329 = vadd.f32 0.0, %v328
  %v330 = vpop.f32.mrb[0].mxu0
  %331 = vmatprep.mubr.f32.mxu0 0.0
  %332 = vmatmul.mubr.f32.gmra.mrb[0].mxu0 %v187
  %v333 = vpop.f32.mrb[0].mxu0
  %v334 = vadd.f32 0.0, %v333
  %v335 = vpop.f32.mrb[0].mxu0
  %336 = vmatprep.mubr.f32.mxu0 0.0
  %337 = vmatmul.mubr.f32.gmra.mrb[0].mxu0 %v188
  %v338 = vpop.f32.mrb[0].mxu0
  %v339 = vadd.f32 0.0, %v338
  %v340 = vpop.f32.mrb[0].mxu0
  %341 = vmatprep.mubr.f32.mxu0 0.0
  %342 = vmatmul.mubr.f32.gmra.mrb[0].mxu0 %v189
  %v343 = vpop.f32.mrb[0].mxu0
  %v344 = vadd.f32 0.0, %v343
  %v345 = vpop.f32.mrb[0].mxu0
  %346 = vmatprep.mubr.f32.mxu0 0.0
  %347 = vmatmul.mubr.f32.gmra.mrb[0].mxu0 %v190
  %v348 = vpop.f32.mrb[0].mxu0
  %v349 = vadd.f32 0.0, %v348
  %v350 = vpop.f32.mrb[0].mxu0
  %351 = vdwg.mxu0
  %v352 = vld [vmem:[%s2] sm:$0xf]
  %v353 = vld [vmem:[%s3] sm:$0x1]
  %v355 = vlaneseq
  %v356 = vshrl.u32 %v355, 7
  %v357 = vsub.s32 0, %v356
  %v358 = vrot.slane %v353, %v357
  %vm360 = vcmask 31744
  %v362 = vsel %vm360, %v274, 0
  %v365 = vsel %vm360, %v279, 0
  %v368 = vsel %vm360, %v284, 0
  %v371 = vsel %vm360, %v289, 0
  %v374 = vsel %vm360, %v294, 0
  %v377 = vsel %vm360, %v299, 0
  %v380 = vsel %vm360, %v304, 0
  %v383 = vsel %vm360, %v309, 0
  %v386 = vsel %vm360, %v314, 0
  %v389 = vsel %vm360, %v319, 0
  %v392 = vsel %vm360, %v324, 0
  %v395 = vsel %vm360, %v329, 0
  %v398 = vsel %vm360, %v334, 0
  %v401 = vsel %vm360, %v339, 0
  %v404 = vsel %vm360, %v344, 0
  %v407 = vsel %vm360, %v349, 0
  %vm409 = vcmask 1043456
  %v411 = vsel %vm409, %v352, 0
  %413 = vmatprep.subr.mxu0 0.0
  %414 = vmatpush1.msra.mxu0 %v411
  %415 = vmatprep.subr.mxu0 0.0
  %416 = vmatpush1.msra.mxu0 0.0
  %417 = vmatprep.subr.mxu0 0.0
  %418 = vmatpush1.msra.mxu0 0.0
  %419 = vmatprep.subr.mxu0 0.0
  %420 = vmatpush1.msra.mxu0 0.0
  %421 = vmatprep.subr.mxu0 0.0
  %422 = vmatpush1.msra.mxu0 0.0
  %423 = vmatprep.subr.mxu0 0.0
  %424 = vmatpush1.msra.mxu0 0.0
  %425 = vmatprep.subr.mxu0 0.0
  %426 = vmatpush1.msra.mxu0 0.0
  %427 = vmatprep.subr.mxu0 0.0
  %428 = vmatpush1.msra.mxu0 0.0
  %429 = vmatprep.subr.mxu0 0.0
  %430 = vmatpush1.msra.mxu0 0.0
  %431 = vmatprep.subr.mxu0 0.0
  %432 = vmatpush1.msra.mxu0 0.0
  %433 = vmatprep.subr.mxu0 0.0
  %434 = vmatpush1.msra.mxu0 0.0
  %435 = vmatprep.subr.mxu0 0.0
  %436 = vmatpush1.msra.mxu0 0.0
  %437 = vmatprep.subr.mxu0 0.0
  %438 = vmatpush1.msra.mxu0 0.0
  %439 = vmatprep.subr.mxu0 0.0
  %440 = vmatpush1.msra.mxu0 0.0
  %441 = vmatprep.subr.mxu0 0.0
  %442 = vmatpush1.msra.mxu0 0.0
  %443 = vmatprep.subr.mxu0 0.0
  %444 = vmatpush1.msra.mxu0 0.0
  %445 = vmatprep.subr.mxu0 0.0
  %446 = vmatpush1.msra.mxu0 0.0
  %447 = vmatprep.subr.mxu0 0.0
  %448 = vmatpush1.msra.mxu0 0.0
  %449 = vmatprep.subr.mxu0 0.0
  %450 = vmatpush1.msra.mxu0 0.0
  %451 = vmatprep.subr.mxu0 0.0
  %452 = vmatpush1.msra.mxu0 0.0
  %453 = vmatprep.subr.mxu0 0.0
  %454 = vmatpush1.msra.mxu0 0.0
  %455 = vmatprep.subr.mxu0 0.0
  %456 = vmatpush1.msra.mxu0 0.0
  %457 = vmatprep.subr.mxu0 0.0
  %458 = vmatpush1.msra.mxu0 0.0
  %459 = vmatprep.subr.mxu0 0.0
  %460 = vmatpush1.msra.mxu0 0.0
  %461 = vmatprep.subr.mxu0 0.0
  %462 = vmatpush1.msra.mxu0 0.0
  %463 = vmatprep.subr.mxu0 0.0
  %464 = vmatpush1.msra.mxu0 0.0
  %465 = vmatprep.subr.mxu0 0.0
  %466 = vmatpush1.msra.mxu0 0.0
  %467 = vmatprep.subr.mxu0 0.0
  %468 = vmatpush1.msra.mxu0 0.0
  %469 = vmatprep.subr.mxu0 0.0
  %470 = vmatpush1.msra.mxu0 0.0
  %471 = vmatprep.subr.mxu0 0.0
  %472 = vmatpush1.msra.mxu0 0.0
  %473 = vmatprep.subr.mxu0 0.0
  %474 = vmatpush1.msra.mxu0 0.0
  %475 = vmatprep.subr.mxu0 0.0
  %476 = vmatpush1.msra.mxu0 0.0
  %477 = vmatprep.mubr.f32.mxu0 0.0
  %478 = vmatmul.mubr.f32.gmra.mrb[0].mxu0 %v362
  %v479 = vpop.f32.mrb[0].mxu0
  %v480 = vadd.f32 %v358, %v479
  %v481 = vpop.f32.mrb[0].mxu0
  %482 = vmatprep.mubr.f32.mxu0 0.0
  %483 = vmatmul.mubr.f32.gmra.mrb[0].mxu0 %v365
  %v484 = vpop.f32.mrb[0].mxu0
  %v485 = vadd.f32 %v358, %v484
  %v486 = vpop.f32.mrb[0].mxu0
  %487 = vmatprep.mubr.f32.mxu0 0.0
  %488 = vmatmul.mubr.f32.gmra.mrb[0].mxu0 %v368
  %v489 = vpop.f32.mrb[0].mxu0
  %v490 = vadd.f32 %v358, %v489
  %v491 = vpop.f32.mrb[0].mxu0
  %492 = vmatprep.mubr.f32.mxu0 0.0
  %493 = vmatmul.mubr.f32.gmra.mrb[0].mxu0 %v371
  %v494 = vpop.f32.mrb[0].mxu0
  %v495 = vadd.f32 %v358, %v494
  %v496 = vpop.f32.mrb[0].mxu0
  %497 = vmatprep.mubr.f32.mxu0 0.0
  %498 = vmatmul.mubr.f32.gmra.mrb[0].mxu0 %v374
  %v499 = vpop.f32.mrb[0].mxu0
  %v500 = vadd.f32 %v358, %v499
  %v501 = vpop.f32.mrb[0].mxu0
  %502 = vmatprep.mubr.f32.mxu0 0.0
  %503 = vmatmul.mubr.f32.gmra.mrb[0].mxu0 %v377
  %v504 = vpop.f32.mrb[0].mxu0
  %v505 = vadd.f32 %v358, %v504
  %v506 = vpop.f32.mrb[0].mxu0
  %507 = vmatprep.mubr.f32.mxu0 0.0
  %508 = vmatmul.mubr.f32.gmra.mrb[0].mxu0 %v380
  %v509 = vpop.f32.mrb[0].mxu0
  %v510 = vadd.f32 %v358, %v509
  %v511 = vpop.f32.mrb[0].mxu0
  %512 = vmatprep.mubr.f32.mxu0 0.0
  %513 = vmatmul.mubr.f32.gmra.mrb[0].mxu0 %v383
  %v514 = vpop.f32.mrb[0].mxu0
  %v515 = vadd.f32 %v358, %v514
  %v516 = vpop.f32.mrb[0].mxu0
  %517 = vmatprep.mubr.f32.mxu0 0.0
  %518 = vmatmul.mubr.f32.gmra.mrb[0].mxu0 %v386
  %v519 = vpop.f32.mrb[0].mxu0
  %v520 = vadd.f32 %v358, %v519
  %v521 = vpop.f32.mrb[0].mxu0
  %522 = vmatprep.mubr.f32.mxu0 0.0
  %523 = vmatmul.mubr.f32.gmra.mrb[0].mxu0 %v389
  %v524 = vpop.f32.mrb[0].mxu0
  %v525 = vadd.f32 %v358, %v524
  %v526 = vpop.f32.mrb[0].mxu0
  %527 = vmatprep.mubr.f32.mxu0 0.0
  %528 = vmatmul.mubr.f32.gmra.mrb[0].mxu0 %v392
  %v529 = vpop.f32.mrb[0].mxu0
  %v530 = vadd.f32 %v358, %v529
  %v531 = vpop.f32.mrb[0].mxu0
  %532 = vmatprep.mubr.f32.mxu0 0.0
  %533 = vmatmul.mubr.f32.gmra.mrb[0].mxu0 %v395
  %v534 = vpop.f32.mrb[0].mxu0
  %v535 = vadd.f32 %v358, %v534
  %v536 = vpop.f32.mrb[0].mxu0
  %537 = vmatprep.mubr.f32.mxu0 0.0
  %538 = vmatmul.mubr.f32.gmra.mrb[0].mxu0 %v398
  %v539 = vpop.f32.mrb[0].mxu0
  %v540 = vadd.f32 %v358, %v539
  %v541 = vpop.f32.mrb[0].mxu0
  %542 = vmatprep.mubr.f32.mxu0 0.0
  %543 = vmatmul.mubr.f32.gmra.mrb[0].mxu0 %v401
  %v544 = vpop.f32.mrb[0].mxu0
  %v545 = vadd.f32 %v358, %v544
  %v546 = vpop.f32.mrb[0].mxu0
  %547 = vmatprep.mubr.f32.mxu0 0.0
  %548 = vmatmul.mubr.f32.gmra.mrb[0].mxu0 %v404
  %v549 = vpop.f32.mrb[0].mxu0
  %v550 = vadd.f32 %v358, %v549
  %v551 = vpop.f32.mrb[0].mxu0
  %552 = vmatprep.mubr.f32.mxu0 0.0
  %553 = vmatmul.mubr.f32.gmra.mrb[0].mxu0 %v407
  %v554 = vpop.f32.mrb[0].mxu0
  %v555 = vadd.f32 %v358, %v554
  %v556 = vpop.f32.mrb[0].mxu0
  %557 = vdwg.mxu0
  %v558 = vmax.f32 %v480, 0.0
  %v559 = vmax.f32 %v485, 0.0
  %v560 = vmax.f32 %v490, 0.0
  %v561 = vmax.f32 %v495, 0.0
  %v562 = vmax.f32 %v500, 0.0
  %v563 = vmax.f32 %v505, 0.0
  %v564 = vmax.f32 %v510, 0.0
  %v565 = vmax.f32 %v515, 0.0
  %v566 = vmax.f32 %v520, 0.0
  %v567 = vmax.f32 %v525, 0.0
  %v568 = vmax.f32 %v530, 0.0
  %v569 = vmax.f32 %v535, 0.0
  %v570 = vmax.f32 %v540, 0.0
  %v571 = vmax.f32 %v545, 0.0
  %v572 = vmax.f32 %v550, 0.0
  %v573 = vmax.f32 %v555, 0.0
  %574 = vmatprep.subr.mxu0 0.0
  %575 = vmatpush1.msra.mxu0 %v558
  %576 = vmatprep.subr.mxu0 0.0
  %577 = vmatpush1.msra.mxu0 %v559
  %578 = vmatprep.subr.mxu0 0.0
  %579 = vmatpush1.msra.mxu0 %v560
  %580 = vmatprep.subr.mxu0 0.0
  %581 = vmatpush1.msra.mxu0 %v561
  %582 = vmatprep.subr.mxu0 0.0
  %583 = vmatpush1.msra.mxu0 %v562
  %584 = vmatprep.subr.mxu0 0.0
  %585 = vmatpush1.msra.mxu0 %v563
  %586 = vmatprep.subr.mxu0 0.0
  %587 = vmatpush1.msra.mxu0 %v564
  %588 = vmatprep.subr.mxu0 0.0
  %589 = vmatpush1.msra.mxu0 %v565
  %590 = vmatprep.subr.mxu0 0.0
  %591 = vmatpush1.msra.mxu0 %v566
  %592 = vmatprep.subr.mxu0 0.0
  %593 = vmatpush1.msra.mxu0 %v567
  %594 = vmatprep.subr.mxu0 0.0
  %595 = vmatpush1.msra.mxu0 %v568
  %596 = vmatprep.subr.mxu0 0.0
  %597 = vmatpush1.msra.mxu0 %v569
  %598 = vmatprep.subr.mxu0 0.0
  %599 = vmatpush1.msra.mxu0 %v570
  %600 = vmatprep.subr.mxu0 0.0
  %601 = vmatpush1.msra.mxu0 %v571
  %602 = vmatprep.subr.mxu0 0.0
  %603 = vmatpush1.msra.mxu0 %v572
  %604 = vmatprep.subr.mxu0 0.0
  %605 = vmatpush1.msra.mxu0 %v573
  %606 = vmatprep.subr.mxu0 0.0
  %607 = vmatpush1.msra.mxu0 0.0
  %608 = vmatprep.subr.mxu0 0.0
  %609 = vmatpush1.msra.mxu0 0.0
  %610 = vmatprep.subr.mxu0 0.0
  %611 = vmatpush1.msra.mxu0 0.0
  %612 = vmatprep.subr.mxu0 0.0
  %613 = vmatpush1.msra.mxu0 0.0
  %614 = vmatprep.subr.mxu0 0.0
  %615 = vmatpush1.msra.mxu0 0.0
  %616 = vmatprep.subr.mxu0 0.0
  %617 = vmatpush1.msra.mxu0 0.0
  %618 = vmatprep.subr.mxu0 0.0
  %619 = vmatpush1.msra.mxu0 0.0
  %620 = vmatprep.subr.mxu0 0.0
  %621 = vmatpush1.msra.mxu0 0.0
  %622 = vmatprep.subr.mxu0 0.0
  %623 = vmatpush1.msra.mxu0 0.0
  %624 = vmatprep.subr.mxu0 0.0
  %625 = vmatpush1.msra.mxu0 0.0
  %626 = vmatprep.subr.mxu0 0.0
  %627 = vmatpush1.msra.mxu0 0.0
  %628 = vmatprep.subr.mxu0 0.0
  %629 = vmatpush1.msra.mxu0 0.0
  %630 = vmatprep.subr.mxu0 0.0
  %631 = vmatpush1.msra.mxu0 0.0
  %632 = vmatprep.subr.mxu0 0.0
  %633 = vmatpush1.msra.mxu0 0.0
  %634 = vmatprep.subr.mxu0 0.0
  %635 = vmatpush1.msra.mxu0 0.0
  %636 = vmatprep.subr.mxu0 0.0
  %637 = vmatpush1.msra.mxu0 0.0
  %638 = vmatprep.mubr.f32.mxu0 0.0
  %639 = vmatmul.mubr.f32.gmra.mrb[0].mxu0 %v175
  %v640 = vpop.f32.mrb[0].mxu0
  %v641 = vadd.f32 0.0, %v640
  %v642 = vpop.f32.mrb[0].mxu0
  %643 = vmatprep.mubr.f32.mxu0 0.0
  %644 = vmatmul.mubr.f32.gmra.mrb[0].mxu0 %v176
  %v645 = vpop.f32.mrb[0].mxu0
  %v646 = vadd.f32 0.0, %v645
  %v647 = vpop.f32.mrb[0].mxu0
  %648 = vmatprep.mubr.f32.mxu0 0.0
  %649 = vmatmul.mubr.f32.gmra.mrb[0].mxu0 %v177
  %v650 = vpop.f32.mrb[0].mxu0
  %v651 = vadd.f32 0.0, %v650
  %v652 = vpop.f32.mrb[0].mxu0
  %653 = vmatprep.mubr.f32.mxu0 0.0
  %654 = vmatmul.mubr.f32.gmra.mrb[0].mxu0 %v178
  %v655 = vpop.f32.mrb[0].mxu0
  %v656 = vadd.f32 0.0, %v655
  %v657 = vpop.f32.mrb[0].mxu0
  %658 = vmatprep.mubr.f32.mxu0 0.0
  %659 = vmatmul.mubr.f32.gmra.mrb[0].mxu0 %v179
  %v660 = vpop.f32.mrb[0].mxu0
  %v661 = vadd.f32 0.0, %v660
  %v662 = vpop.f32.mrb[0].mxu0
  %663 = vmatprep.mubr.f32.mxu0 0.0
  %664 = vmatmul.mubr.f32.gmra.mrb[0].mxu0 %v180
  %v665 = vpop.f32.mrb[0].mxu0
  %v666 = vadd.f32 0.0, %v665
  %v667 = vpop.f32.mrb[0].mxu0
  %668 = vmatprep.mubr.f32.mxu0 0.0
  %669 = vmatmul.mubr.f32.gmra.mrb[0].mxu0 %v181
  %v670 = vpop.f32.mrb[0].mxu0
  %v671 = vadd.f32 0.0, %v670
  %v672 = vpop.f32.mrb[0].mxu0
  %673 = vmatprep.mubr.f32.mxu0 0.0
  %674 = vmatmul.mubr.f32.gmra.mrb[0].mxu0 %v182
  %v675 = vpop.f32.mrb[0].mxu0
  %v676 = vadd.f32 0.0, %v675
  %v677 = vpop.f32.mrb[0].mxu0
  %678 = vmatprep.mubr.f32.mxu0 0.0
  %679 = vmatmul.mubr.f32.gmra.mrb[0].mxu0 %v183
  %v680 = vpop.f32.mrb[0].mxu0
  %v681 = vadd.f32 0.0, %v680
  %v682 = vpop.f32.mrb[0].mxu0
  %683 = vmatprep.mubr.f32.mxu0 0.0
  %684 = vmatmul.mubr.f32.gmra.mrb[0].mxu0 %v184
  %v685 = vpop.f32.mrb[0].mxu0
  %v686 = vadd.f32 0.0, %v685
  %v687 = vpop.f32.mrb[0].mxu0
  %688 = vmatprep.mubr.f32.mxu0 0.0
  %689 = vmatmul.mubr.f32.gmra.mrb[0].mxu0 %v185
  %v690 = vpop.f32.mrb[0].mxu0
  %v691 = vadd.f32 0.0, %v690
  %v692 = vpop.f32.mrb[0].mxu0
  %693 = vmatprep.mubr.f32.mxu0 0.0
  %694 = vmatmul.mubr.f32.gmra.mrb[0].mxu0 %v186
  %v695 = vpop.f32.mrb[0].mxu0
  %v696 = vadd.f32 0.0, %v695
  %v697 = vpop.f32.mrb[0].mxu0
  %698 = vmatprep.mubr.f32.mxu0 0.0
  %699 = vmatmul.mubr.f32.gmra.mrb[0].mxu0 %v187
  %v700 = vpop.f32.mrb[0].mxu0
  %v701 = vadd.f32 0.0, %v700
  %v702 = vpop.f32.mrb[0].mxu0
  %703 = vmatprep.mubr.f32.mxu0 0.0
  %704 = vmatmul.mubr.f32.gmra.mrb[0].mxu0 %v188
  %v705 = vpop.f32.mrb[0].mxu0
  %v706 = vadd.f32 0.0, %v705
  %v707 = vpop.f32.mrb[0].mxu0
  %708 = vmatprep.mubr.f32.mxu0 0.0
  %709 = vmatmul.mubr.f32.gmra.mrb[0].mxu0 %v189
  %v710 = vpop.f32.mrb[0].mxu0
  %v711 = vadd.f32 0.0, %v710
  %v712 = vpop.f32.mrb[0].mxu0
  %713 = vmatprep.mubr.f32.mxu0 0.0
  %714 = vmatmul.mubr.f32.gmra.mrb[0].mxu0 %v190
  %v715 = vpop.f32.mrb[0].mxu0
  %v716 = vadd.f32 0.0, %v715
  %v717 = vpop.f32.mrb[0].mxu0
  %718 = vdwg.mxu0
  %v719 = vld [vmem:[%s4] sm:$0xff]
  %v720 = vld [vmem:[%s4 + $0x8] sm:$0xff]
  %v721 = vld [vmem:[%s4 + $0x10] sm:$0xff]
  %v722 = vld [vmem:[%s4 + $0x18] sm:$0xff]
  %v723 = vld [vmem:[%s5] sm:$0x1]
  %v725 = vlaneseq
  %v726 = vshrl.u32 %v725, 7
  %v727 = vsub.s32 0, %v726
  %v728 = vrot.slane %v723, %v727
  %vm730 = vcmask 261120
  %v732 = vsel %vm730, %v641, 0
  %v735 = vsel %vm730, %v646, 0
  %v738 = vsel %vm730, %v651, 0
  %v741 = vsel %vm730, %v656, 0
  %v744 = vsel %vm730, %v661, 0
  %v747 = vsel %vm730, %v666, 0
  %v750 = vsel %vm730, %v671, 0
  %v753 = vsel %vm730, %v676, 0
  %v756 = vsel %vm730, %v681, 0
  %v759 = vsel %vm730, %v686, 0
  %v762 = vsel %vm730, %v691, 0
  %v765 = vsel %vm730, %v696, 0
  %v768 = vsel %vm730, %v701, 0
  %v771 = vsel %vm730, %v706, 0
  %v774 = vsel %vm730, %v711, 0
  %v777 = vsel %vm730, %v716, 0
  %779 = vmatprep.subr.mxu0 0.0
  %780 = vmatpush1.msra.mxu0 %v719
  %781 = vmatprep.subr.mxu0 0.0
  %782 = vmatpush1.msra.mxu0 %v720
  %783 = vmatprep.subr.mxu0 0.0
  %784 = vmatpush1.msra.mxu0 %v721
  %785 = vmatprep.subr.mxu0 0.0
  %786 = vmatpush1.msra.mxu0 %v722
  %787 = vmatprep.subr.mxu0 0.0
  %788 = vmatpush1.msra.mxu0 0.0
  %789 = vmatprep.subr.mxu0 0.0
  %790 = vmatpush1.msra.mxu0 0.0
  %791 = vmatprep.subr.mxu0 0.0
  %792 = vmatpush1.msra.mxu0 0.0
  %793 = vmatprep.subr.mxu0 0.0
  %794 = vmatpush1.msra.mxu0 0.0
  %795 = vmatprep.subr.mxu0 0.0
  %796 = vmatpush1.msra.mxu0 0.0
  %797 = vmatprep.subr.mxu0 0.0
  %798 = vmatpush1.msra.mxu0 0.0
  %799 = vmatprep.subr.mxu0 0.0
  %800 = vmatpush1.msra.mxu0 0.0
  %801 = vmatprep.subr.mxu0 0.0
  %802 = vmatpush1.msra.mxu0 0.0
  %803 = vmatprep.subr.mxu0 0.0
  %804 = vmatpush1.msra.mxu0 0.0
  %805 = vmatprep.subr.mxu0 0.0
  %806 = vmatpush1.msra.mxu0 0.0
  %807 = vmatprep.subr.mxu0 0.0
  %808 = vmatpush1.msra.mxu0 0.0
  %809 = vmatprep.subr.mxu0 0.0
  %810 = vmatpush1.msra.mxu0 0.0
  %811 = vmatprep.subr.mxu0 0.0
  %812 = vmatpush1.msra.mxu0 0.0
  %813 = vmatprep.subr.mxu0 0.0
  %814 = vmatpush1.msra.mxu0 0.0
  %815 = vmatprep.subr.mxu0 0.0
  %816 = vmatpush1.msra.mxu0 0.0
  %817 = vmatprep.subr.mxu0 0.0
  %818 = vmatpush1.msra.mxu0 0.0
  %819 = vmatprep.subr.mxu0 0.0
  %820 = vmatpush1.msra.mxu0 0.0
  %821 = vmatprep.subr.mxu0 0.0
  %822 = vmatpush1.msra.mxu0 0.0
  %823 = vmatprep.subr.mxu0 0.0
  %824 = vmatpush1.msra.mxu0 0.0
  %825 = vmatprep.subr.mxu0 0.0
  %826 = vmatpush1.msra.mxu0 0.0
  %827 = vmatprep.subr.mxu0 0.0
  %828 = vmatpush1.msra.mxu0 0.0
  %829 = vmatprep.subr.mxu0 0.0
  %830 = vmatpush1.msra.mxu0 0.0
  %831 = vmatprep.subr.mxu0 0.0
  %832 = vmatpush1.msra.mxu0 0.0
  %833 = vmatprep.subr.mxu0 0.0
  %834 = vmatpush1.msra.mxu0 0.0
  %835 = vmatprep.subr.mxu0 0.0
  %836 = vmatpush1.msra.mxu0 0.0
  %837 = vmatprep.subr.mxu0 0.0
  %838 = vmatpush1.msra.mxu0 0.0
  %839 = vmatprep.subr.mxu0 0.0
  %840 = vmatpush1.msra.mxu0 0.0
  %841 = vmatprep.subr.mxu0 0.0
  %842 = vmatpush1.msra.mxu0 0.0
  %843 = vmatprep.mubr.f32.mxu0 0.0
  %844 = vmatmul.mubr.f32.gmra.mrb[0].mxu0 %v732
  %v845 = vpop.f32.mrb[0].mxu0
  %v846 = vadd.f32 %v728, %v845
  %v847 = vpop.f32.mrb[0].mxu0
  %848 = vmatprep.mubr.f32.mxu0 0.0
  %849 = vmatmul.mubr.f32.gmra.mrb[0].mxu0 %v735
  %v850 = vpop.f32.mrb[0].mxu0
  %v851 = vadd.f32 %v728, %v850
  %v852 = vpop.f32.mrb[0].mxu0
  %853 = vmatprep.mubr.f32.mxu0 0.0
  %854 = vmatmul.mubr.f32.gmra.mrb[0].mxu0 %v738
  %v855 = vpop.f32.mrb[0].mxu0
  %v856 = vadd.f32 %v728, %v855
  %v857 = vpop.f32.mrb[0].mxu0
  %858 = vmatprep.mubr.f32.mxu0 0.0
  %859 = vmatmul.mubr.f32.gmra.mrb[0].mxu0 %v741
  %v860 = vpop.f32.mrb[0].mxu0
  %v861 = vadd.f32 %v728, %v860
  %v862 = vpop.f32.mrb[0].mxu0
  %863 = vmatprep.mubr.f32.mxu0 0.0
  %864 = vmatmul.mubr.f32.gmra.mrb[0].mxu0 %v744
  %v865 = vpop.f32.mrb[0].mxu0
  %v866 = vadd.f32 %v728, %v865
  %v867 = vpop.f32.mrb[0].mxu0
  %868 = vmatprep.mubr.f32.mxu0 0.0
  %869 = vmatmul.mubr.f32.gmra.mrb[0].mxu0 %v747
  %v870 = vpop.f32.mrb[0].mxu0
  %v871 = vadd.f32 %v728, %v870
  %v872 = vpop.f32.mrb[0].mxu0
  %873 = vmatprep.mubr.f32.mxu0 0.0
  %874 = vmatmul.mubr.f32.gmra.mrb[0].mxu0 %v750
  %v875 = vpop.f32.mrb[0].mxu0
  %v876 = vadd.f32 %v728, %v875
  %v877 = vpop.f32.mrb[0].mxu0
  %878 = vmatprep.mubr.f32.mxu0 0.0
  %879 = vmatmul.mubr.f32.gmra.mrb[0].mxu0 %v753
  %v880 = vpop.f32.mrb[0].mxu0
  %v881 = vadd.f32 %v728, %v880
  %v882 = vpop.f32.mrb[0].mxu0
  %883 = vmatprep.mubr.f32.mxu0 0.0
  %884 = vmatmul.mubr.f32.gmra.mrb[0].mxu0 %v756
  %v885 = vpop.f32.mrb[0].mxu0
  %v886 = vadd.f32 %v728, %v885
  %v887 = vpop.f32.mrb[0].mxu0
  %888 = vmatprep.mubr.f32.mxu0 0.0
  %889 = vmatmul.mubr.f32.gmra.mrb[0].mxu0 %v759
  %v890 = vpop.f32.mrb[0].mxu0
  %v891 = vadd.f32 %v728, %v890
  %v892 = vpop.f32.mrb[0].mxu0
  %893 = vmatprep.mubr.f32.mxu0 0.0
  %894 = vmatmul.mubr.f32.gmra.mrb[0].mxu0 %v762
  %v895 = vpop.f32.mrb[0].mxu0
  %v896 = vadd.f32 %v728, %v895
  %v897 = vpop.f32.mrb[0].mxu0
  %898 = vmatprep.mubr.f32.mxu0 0.0
  %899 = vmatmul.mubr.f32.gmra.mrb[0].mxu0 %v765
  %v900 = vpop.f32.mrb[0].mxu0
  %v901 = vadd.f32 %v728, %v900
  %v902 = vpop.f32.mrb[0].mxu0
  %903 = vmatprep.mubr.f32.mxu0 0.0
  %904 = vmatmul.mubr.f32.gmra.mrb[0].mxu0 %v768
  %v905 = vpop.f32.mrb[0].mxu0
  %v906 = vadd.f32 %v728, %v905
  %v907 = vpop.f32.mrb[0].mxu0
  %908 = vmatprep.mubr.f32.mxu0 0.0
  %909 = vmatmul.mubr.f32.gmra.mrb[0].mxu0 %v771
  %v910 = vpop.f32.mrb[0].mxu0
  %v911 = vadd.f32 %v728, %v910
  %v912 = vpop.f32.mrb[0].mxu0
  %913 = vmatprep.mubr.f32.mxu0 0.0
  %914 = vmatmul.mubr.f32.gmra.mrb[0].mxu0 %v774
  %v915 = vpop.f32.mrb[0].mxu0
  %v916 = vadd.f32 %v728, %v915
  %v917 = vpop.f32.mrb[0].mxu0
  %918 = vmatprep.mubr.f32.mxu0 0.0
  %919 = vmatmul.mubr.f32.gmra.mrb[0].mxu0 %v777
  %v920 = vpop.f32.mrb[0].mxu0
  %v921 = vadd.f32 %v728, %v920
  %v922 = vpop.f32.mrb[0].mxu0
  %923 = vdwg.mxu0
  %924 = vst [vmem:[%s6] sm:$0xff] %v846
  %925 = vst [vmem:[%s6 + $0x8] sm:$0xff] %v851
  %926 = vst [vmem:[%s6 + $0x10] sm:$0xff] %v856
  %927 = vst [vmem:[%s6 + $0x18] sm:$0xff] %v861
  %928 = vst [vmem:[%s6 + $0x20] sm:$0xff] %v866
  %929 = vst [vmem:[%s6 + $0x28] sm:$0xff] %v871
  %930 = vst [vmem:[%s6 + $0x30] sm:$0xff] %v876
  %931 = vst [vmem:[%s6 + $0x38] sm:$0xff] %v881
  %932 = vst [vmem:[%s6 + $0x40] sm:$0xff] %v886
  %933 = vst [vmem:[%s6 + $0x48] sm:$0xff] %v891
  %934 = vst [vmem:[%s6 + $0x50] sm:$0xff] %v896
  %935 = vst [vmem:[%s6 + $0x58] sm:$0xff] %v901
  %936 = vst [vmem:[%s6 + $0x60] sm:$0xff] %v906
  %937 = vst [vmem:[%s6 + $0x68] sm:$0xff] %v911
  %938 = vst [vmem:[%s6 + $0x70] sm:$0xff] %v916
  %939 = vst [vmem:[%s6 + $0x78] sm:$0xff] %v921
  // Predicated region
  $region26: #{gcn_forward.1} parent=0 // pred_check
    _
  $region27: #{gcn_forward.1} parent=0 // pred_check_branch
    %941 = sbr.rel (0) target = $region29
  $region28: #{gcn_forward.1} parent=0 // pred_region
    _
  $region29: #{gcn_forward.1} parent=0 // pred_fallthru
    _
  // Predicated region
  $region30: #{gcn_forward.1} parent=0 // pred_check
    _
  $region31: #{gcn_forward.1} parent=0 // pred_check_branch
    %943 = sbr.rel (0) target = $region33
  $region32: #{gcn_forward.1} parent=0 // pred_region
    _
  $region33: #{gcn_forward.1} parent=0 // pred_fallthru
    _

</llo_original>
